<compile_context>
chip_gen: v7x
topology: tpu7x:2x2x1
jax: 0.10.0
libtpu: 0.0.40
codegen_flags: <defaults>
</compile_context>

<pallas_src>
import functools
import math

import jax
import jax.numpy as jnp
from jax.experimental import pallas as pl
from jax.experimental.pallas import tpu as pltpu


def _attn_mlp_kernel(x_ref, w1_ref, w2_ref, out_ref, *,
                     bb, nq, nk, o, approx_recip):
    """Fused q/k MLPs + batched scaled-dot-product + softmax for bb batches."""
    f32 = jnp.float32

    # Layer 1: one block-diagonal matmul covers the q-MLP and the k-MLP for
    # all bb*(nq+nk) rows; biases are folded in via the ones columns of x.
    h = jnp.dot(x_ref[...], w1_ref[...], preferred_element_type=f32)
    h = jnp.maximum(h, 0.0).astype(w2_ref.dtype)

    # Layer 2: stacked weights (w2q*scale over the q-hidden block, w2k over
    # the k-hidden block, bias rows driven by the indicator columns).  The
    # "other" hidden block is exactly zero after ReLU, so no contamination.
    proj = jnp.dot(h, w2_ref[...], preferred_element_type=f32)   # (bb*(nq+nk), o)

    proj3 = proj.reshape(bb, nq + nk, o)
    qp = proj3[:, :nq, :].astype(x_ref.dtype)   # (bb, nq, o); scale pre-folded
    kp = proj3[:, nq:, :].astype(x_ref.dtype)   # (bb, nk, o)

    # Batched scores: single dot_general, batch dim 0, contract feature dim 2
    # (no transpose on the critical path), f32 accumulation.
    s = jax.lax.dot_general(
        qp, kp,
        dimension_numbers=(((2,), (2,)), ((0,), (0,))),
        preferred_element_type=f32)              # (bb, nq, nk)

    # One softmax over the whole block; approx reciprocal rides the EUP slot.
    m = jnp.max(s, axis=-1, keepdims=True)
    e = jnp.exp(s - m)
    inv = pl.reciprocal(jnp.sum(e, axis=-1, keepdims=True), approx=approx_recip)
    out_ref[...] = (e * inv).astype(out_ref.dtype)


def attn_mlp_comparison(q, k, params, out_features, *,
                        batch_block=None, mxu_dtype=None):
    """q: (B, NQ, F), k: (B, NK, F). Returns (B, NQ, NK) softmax attention weights.

    batch_block: batches per grid step (default: all -> grid=(1,)).  Only set
                 to B // 2 on v7x when per-core work is substantial.
    mxu_dtype:   e.g. jnp.bfloat16 on v6e/v7x (MXU fast path); accumulation
                 and softmax stay f32.  Leave None on v5e.
    """
    B, NQ, F = q.shape
    Bk, NK, Fk = k.shape
    assert Bk == B and Fk == F
    H = params["w1q"].shape[1]
    O = out_features
    scale = O ** (-0.5)

    BB = B if batch_block is None else batch_block
    assert B % BB == 0, "batch_block must divide batch"
    nblocks = B // BB

    R = NQ + NK          # rows per batch in the fused layout (q rows then k rows)
    Fa = 2 * F + 2       # augmented input width  ([qf, 0, 1, 0] / [0, kf, 0, 1])
    Ha = 2 * H + 2       # augmented hidden width ([hq, hk, is_q, is_k])
    f32 = jnp.float32

    # --- fused layer-1 weights: blockdiag(w1q, w1k) + bias rows + indicators ---
    w1a = jnp.zeros((Fa, Ha), f32)
    w1a = w1a.at[:F, :H].set(params["w1q"])
    w1a = w1a.at[F:2 * F, H:2 * H].set(params["w1k"])
    w1a = w1a.at[2 * F, :H].set(params["b1q"].reshape(H))
    w1a = w1a.at[2 * F + 1, H:2 * H].set(params["b1k"].reshape(H))
    w1a = w1a.at[2 * F, 2 * H].set(1.0)          # pass q indicator through ReLU
    w1a = w1a.at[2 * F + 1, 2 * H + 1].set(1.0)  # pass k indicator through ReLU

    # --- fused layer-2 weights: stacked (w2q*scale ; w2k) + bias rows ----------
    w2a = jnp.zeros((Ha, O), f32)
    w2a = w2a.at[:H, :].set(params["w2q"] * scale)
    w2a = w2a.at[H:2 * H, :].set(params["w2k"])
    w2a = w2a.at[2 * H, :].set(params["b2q"].reshape(O) * scale)
    w2a = w2a.at[2 * H + 1, :].set(params["b2k"].reshape(O))

    # --- augmented input: per-batch [q rows | k rows] with indicator ones ------
    x_aug = jnp.zeros((B, R, Fa), f32)
    x_aug = x_aug.at[:, :NQ, :F].set(q)
    x_aug = x_aug.at[:, :NQ, 2 * F].set(1.0)
    x_aug = x_aug.at[:, NQ:, F:2 * F].set(k)
    x_aug = x_aug.at[:, NQ:, 2 * F + 1].set(1.0)
    x_aug = x_aug.reshape(B * R, Fa)

    if mxu_dtype is not None:
        x_aug = x_aug.astype(mxu_dtype)
        w1a = w1a.astype(mxu_dtype)
        w2a = w2a.astype(mxu_dtype)

    kern = functools.partial(_attn_mlp_kernel, bb=BB, nq=NQ, nk=NK, o=O,
                             approx_recip=(mxu_dtype is not None))

    # NOTE(v7x, large shapes): the two weight specs have constant index_maps,
    # so when shapes grow set pipeline_mode=pl.Buffered(1) on them and cap
    # vmem_limit_bytes in CompilerParams; unnecessary at these toy sizes.
    out = pl.pallas_call(
        kern,
        out_shape=jax.ShapeDtypeStruct((B, NQ, NK), jnp.float32),
        grid_spec=pltpu.PrefetchScalarGridSpec(
            num_scalar_prefetch=0,
            grid=(nblocks,),
            in_specs=[
                pl.BlockSpec((BB * R, Fa), lambda i: (i, 0)),   # fused q/k rows
                pl.BlockSpec((Fa, Ha), lambda i: (0, 0)),        # fused layer-1 W
                pl.BlockSpec((Ha, O), lambda i: (0, 0)),         # fused layer-2 W
            ],
            out_specs=pl.BlockSpec((BB, NQ, NK), lambda i: (i, 0, 0)),
        ),
        compiler_params=pltpu.CompilerParams(
            dimension_semantics=("parallel",)),
    )(x_aug, w1a, w2a)

    return out


def xavier_uniform(key, fan_in, fan_out, dtype=jnp.float32):
    """Xavier/Glorot uniform init, stored (fan_in, fan_out) so kernel does x @ W."""
    bound = math.sqrt(6.0 / (fan_in + fan_out))
    return jax.random.uniform(key, (fan_in, fan_out), dtype=dtype,
                              minval=-bound, maxval=bound)


def init_params(key, in_features, out_features, hidden_dim):
    ks = jax.random.split(key, 4)
    return {
        "w1q": xavier_uniform(ks[0], in_features, hidden_dim),
        "b1q": jnp.zeros((1, hidden_dim), jnp.float32),
        "w2q": xavier_uniform(ks[1], hidden_dim, out_features),
        "b2q": jnp.zeros((1, out_features), jnp.float32),
        "w1k": xavier_uniform(ks[2], in_features, hidden_dim),
        "b1k": jnp.zeros((1, hidden_dim), jnp.float32),
        "w2k": xavier_uniform(ks[3], hidden_dim, out_features),
        "b2k": jnp.zeros((1, out_features), jnp.float32),
    }


def reference_jax(q, k, p, out_features):
    scale = out_features ** (-0.5)
    hq = jnp.maximum(q @ p["w1q"] + p["b1q"], 0.0)
    qp = (hq @ p["w2q"] + p["b2q"]) * scale
    hk = jnp.maximum(k @ p["w1k"] + p["b1k"], 0.0)
    kp = hk @ p["w2k"] + p["b2k"]
    scores = jnp.einsum("bqo,bko->bqk", qp, kp)
    return jax.nn.softmax(scores, axis=2)


if __name__ == "__main__":
    # Small shapes consistent with the module's forward:
    B, NQ, NK = 2, 8, 8
    IN_FEATURES, OUT_FEATURES, HIDDEN = 16, 16, 32

    key = jax.random.PRNGKey(0)
    kq, kk, kp = jax.random.split(key, 3)
    q = jax.random.normal(kq, (B, NQ, IN_FEATURES), jnp.float32)
    k = jax.random.normal(kk, (B, NK, IN_FEATURES), jnp.float32)
    params = init_params(kp, IN_FEATURES, OUT_FEATURES, HIDDEN)

    ref = jax.block_until_ready(reference_jax(q, k, params, OUT_FEATURES))

    # f32 path (exact reciprocal): tight tolerance against the pure-JAX reference.
    out = jax.block_until_ready(attn_mlp_comparison(q, k, params, OUT_FEATURES))
    assert out.shape == (B, NQ, NK)
    assert jnp.allclose(out, ref, atol=1e-5, rtol=1e-5)

    # bf16 MXU path (v6e/v7x fast path, approx reciprocal): loose tolerance.
    out_bf16 = jax.block_until_ready(
        attn_mlp_comparison(q, k, params, OUT_FEATURES, mxu_dtype=jnp.bfloat16))
    assert out_bf16.shape == (B, NQ, NK)
    assert jnp.allclose(out_bf16, ref, atol=5e-2)

    print("KERNEL_OK")
</pallas_src>

<mosaic_0001>
module attributes {stable_mosaic.version = 11 : i64} {
  func.func @_attn_mlp_kernel(%arg0: i32, %arg1: memref<32x34xf32, #tpu.memory_space<vmem>>, %arg2: memref<34x66xf32, #tpu.memory_space<vmem>>, %arg3: memref<66x16xf32, #tpu.memory_space<vmem>>, %arg4: memref<2x8x8xf32, #tpu.memory_space<vmem>>) attributes {dimension_semantics = [#tpu.dimension_semantics<parallel>], iteration_bounds = array<i64: 1>, scalar_prefetch = 0 : i64, scratch_operands = 0 : i64, tpu.core_type = #tpu.core_type<tc>, window_params = [{transform_indices = @transform_0, window_bounds = array<i64: 32, 34>}, {pipeline_mode = #tpu.pipeline_mode<synchronous>, transform_indices = @transform_1, window_bounds = array<i64: 34, 66>}, {pipeline_mode = #tpu.pipeline_mode<synchronous>, transform_indices = @transform_2, window_bounds = array<i64: 66, 16>}, {transform_indices = @transform_3, window_bounds = array<i64: 2, 8, 8>}]} {
    %c0 = arith.constant 0 : index
    %c0_0 = arith.constant 0 : index
    %0 = vector.load %arg1[%c0, %c0_0] : memref<32x34xf32, #tpu.memory_space<vmem>>, vector<32x34xf32>
    %c0_1 = arith.constant 0 : index
    %c0_2 = arith.constant 0 : index
    %1 = vector.load %arg2[%c0_1, %c0_2] : memref<34x66xf32, #tpu.memory_space<vmem>>, vector<34x66xf32>
    %cst = arith.constant dense<0.000000e+00> : vector<32x66xf32>
    %2 = tpu.matmul %0, %1, %cst {dimension_numbers = #tpu.dot_dimension_numbers<[1], [0], [0], [1], [0, 0, 1, 1], [], []>} : vector<32x34xf32>, vector<34x66xf32>, vector<32x66xf32> -> vector<32x66xf32>
    %cst_3 = arith.constant 0.000000e+00 : f32
    %3 = vector.broadcast %cst_3 : f32 to vector<32x66xf32>
    %4 = arith.maximumf %2, %3 : vector<32x66xf32>
    %c0_4 = arith.constant 0 : index
    %c0_5 = arith.constant 0 : index
    %5 = vector.load %arg3[%c0_4, %c0_5] : memref<66x16xf32, #tpu.memory_space<vmem>>, vector<66x16xf32>
    %cst_6 = arith.constant dense<0.000000e+00> : vector<32x16xf32>
    %6 = tpu.matmul %4, %5, %cst_6 {dimension_numbers = #tpu.dot_dimension_numbers<[1], [0], [0], [1], [0, 0, 1, 1], [], []>} : vector<32x66xf32>, vector<66x16xf32>, vector<32x16xf32> -> vector<32x16xf32>
    %7 = vector.shape_cast %6 : vector<32x16xf32> to vector<2x16x16xf32>
    %8 = vector.extract_strided_slice %7 {offsets = [0, 0, 0], sizes = [2, 8, 16], strides = [1, 1, 1]} : vector<2x16x16xf32> to vector<2x8x16xf32>
    %9 = vector.extract_strided_slice %7 {offsets = [0, 8, 0], sizes = [2, 8, 16], strides = [1, 1, 1]} : vector<2x16x16xf32> to vector<2x8x16xf32>
    %cst_7 = arith.constant dense<0.000000e+00> : vector<2x8x8xf32>
    %10 = tpu.matmul %8, %9, %cst_7 {dimension_numbers = #tpu.dot_dimension_numbers<[2], [2], [1], [1], [0, 0, 0, 1, 1, 1], [0], [0]>} : vector<2x8x16xf32>, vector<2x8x16xf32>, vector<2x8x8xf32> -> vector<2x8x8xf32>
    %cst_8 = arith.constant dense<0xFF800000> : vector<2x8xf32>
    %11 = vector.multi_reduction <maximumf>, %10, %cst_8 [2] : vector<2x8x8xf32> to vector<2x8xf32>
    %12 = vector.shape_cast %11 : vector<2x8xf32> to vector<2x8x1xf32>
    %13 = vector.broadcast %12 : vector<2x8x1xf32> to vector<2x8x8xf32>
    %14 = arith.subf %10, %13 : vector<2x8x8xf32>
    %15 = math.exp %14 : vector<2x8x8xf32>
    %cst_9 = arith.constant dense<0.000000e+00> : vector<2x8xf32>
    %16 = vector.multi_reduction <add>, %15, %cst_9 [2] : vector<2x8x8xf32> to vector<2x8xf32>
    %17 = vector.shape_cast %16 : vector<2x8xf32> to vector<2x8x1xf32>
    %18 = tpu.reciprocal %17 : vector<2x8x1xf32> -> vector<2x8x1xf32>
    %19 = vector.broadcast %18 : vector<2x8x1xf32> to vector<2x8x8xf32>
    %20 = arith.mulf %15, %19 : vector<2x8x8xf32>
    %c0_10 = arith.constant 0 : index
    %c0_11 = arith.constant 0 : index
    %c0_12 = arith.constant 0 : index
    %21 = vector.load %arg4[%c0_10, %c0_11, %c0_12] : memref<2x8x8xf32, #tpu.memory_space<vmem>>, vector<2x8x8xf32>
    tpu.vector_store %arg4[%c0_10, %c0_11, %c0_12], %20 {strides = array<i32>} : memref<2x8x8xf32, #tpu.memory_space<vmem>>, vector<2x8x8xf32>,
    return
  }
  func.func @transform_0(%arg0: i32) -> (i32, i32) {
    %c0_i32 = arith.constant 0 : i32
    %c0_i32_0 = arith.constant 0 : i32
    return %arg0, %c0_i32 : i32, i32
  }
  func.func @transform_1(%arg0: i32) -> (i32, i32) {
    %c0_i32 = arith.constant 0 : i32
    %c0_i32_0 = arith.constant 0 : i32
    %c0_i32_1 = arith.constant 0 : i32
    return %c0_i32, %c0_i32_0 : i32, i32
  }
  func.func @transform_2(%arg0: i32) -> (i32, i32) {
    %c0_i32 = arith.constant 0 : i32
    %c0_i32_0 = arith.constant 0 : i32
    %c0_i32_1 = arith.constant 0 : i32
    return %c0_i32, %c0_i32_0 : i32, i32
  }
  func.func @transform_3(%arg0: i32) -> (i32, i32, i32) {
    %c0_i32 = arith.constant 0 : i32
    %c0_i32_0 = arith.constant 0 : i32
    %c0_i32_1 = arith.constant 0 : i32
    return %arg0, %c0_i32, %c0_i32_0 : i32, i32, i32
  }
}

</mosaic_0001>

<llo_original>
// kernel: tpu_custom_call.1
$region0: #{tpu_custom_call.1}
  #allocation0 [shape = 'u32[]', space=smem, size = 0x4, offset = 0x4, fixed_abs, tag = 'smem constant byte address 0x4 - core index']
  #allocation1 [shape = 'u32[144,128]{1,0:T(1,128)}', space=vmem, size = 0x12000, scoped, tag = 'internal scratch']
  %s0 = inlined_call_operand.vmem [shape: f32[32,34], index: 0, kind: input, shape index: {}]
  %s1 = inlined_call_operand.vmem [shape: f32[34,66], index: 1, kind: input, shape index: {}]
  %s2 = inlined_call_operand.vmem [shape: f32[66,16], index: 2, kind: input, shape index: {}]
  %s3 = inlined_call_operand.hbm [shape: f32[2,8,8], index: 3, kind: output, shape index: {}]
  %s4 = sld [smem:[#allocation0]]
  $region22: #{tpu_custom_call.1} parent=0
    _
  %s6 = ssub.s32 1, %s4
  %s7 = scalar_select 0, %s6, %s4
  $region1: #{tpu_custom_call.1} parent=0
    #allocation2 [shape = 'u8[8192]{0}', space=vmem, size = 0x2000, scoped, tag = 'output window, operand 0, single buffered']
    #allocation3 [shape = 's32[1]{0}', space=sflag, size = 0x4, scoped, tag = 'scoped memory for tpu_custom_call.1']
    %8 = vsyncpa [#allocation3], 0
    // Predicated region
    $region2: #{tpu_custom_call.1} parent=1 // pred_check
      _
    $region3: #{tpu_custom_call.1} parent=1 // pred_check_branch
      %10 = sbr.rel (0) target = $region5
    $region4: #{tpu_custom_call.1} parent=1 // pred_region
      _
    $region5: #{tpu_custom_call.1} parent=1 // pred_fallthru
      _
    // Predicated region
    $region6: #{tpu_custom_call.1} parent=1 // pred_check
      _
    $region7: #{tpu_custom_call.1} parent=1 // pred_check_branch
      %12 = sbr.rel (0) target = $region9
    $region8: #{tpu_custom_call.1} parent=1 // pred_region
      _
    $region9: #{tpu_custom_call.1} parent=1 // pred_fallthru
      _
    // Predicated region
    $region10: #{tpu_custom_call.1} parent=1 // pred_check
      _
    $region11: #{tpu_custom_call.1} parent=1 // pred_check_branch
      %14 = sbr.rel (0) target = $region13
    $region12: #{tpu_custom_call.1} parent=1 // pred_region
      _
    $region13: #{tpu_custom_call.1} parent=1 // pred_fallthru
      _
    %v15 = vld [vmem:[%s0] sm:$0xff]
    %v16 = vld [vmem:[%s0 + $0x8] sm:$0xff]
    %v17 = vld [vmem:[%s0 + $0x10] sm:$0xff]
    %v18 = vld [vmem:[%s0 + $0x18] sm:$0xff]
    %v19 = vld [vmem:[%s1] sm:$0xff]
    %v20 = vld [vmem:[%s1 + $0x8] sm:$0xff]
    %v21 = vld [vmem:[%s1 + $0x10] sm:$0xff]
    %v22 = vld [vmem:[%s1 + $0x18] sm:$0xff]
    %v23 = vld [vmem:[%s1 + $0x20] sm:$0x3]
    %vm24 = vcmask 277504
    %v26 = vsel %vm24, %v15, 0
    %v29 = vsel %vm24, %v16, 0
    %v32 = vsel %vm24, %v17, 0
    %v35 = vsel %vm24, %v18, 0
    %vm37 = vcmask 1041408
    %v39 = vsel %vm37, %v23, 0
    %41 = vmatprep.subr.mxu0 0.0
    %42 = vmatpush1.msra.mxu0 %v19
    %43 = vmatprep.subr.mxu0 0.0
    %44 = vmatpush1.msra.mxu0 %v20
    %45 = vmatprep.subr.mxu0 0.0
    %46 = vmatpush1.msra.mxu0 %v21
    %47 = vmatprep.subr.mxu0 0.0
    %48 = vmatpush1.msra.mxu0 %v22
    %49 = vmatprep.subr.mxu0 0.0
    %50 = vmatpush1.msra.mxu0 %v39
    %51 = vmatprep.subr.mxu0 0.0
    %52 = vmatpush1.msra.mxu0 0.0
    %53 = vmatprep.subr.mxu0 0.0
    %54 = vmatpush1.msra.mxu0 0.0
    %55 = vmatprep.subr.mxu0 0.0
    %56 = vmatpush1.msra.mxu0 0.0
    %57 = vmatprep.subr.mxu0 0.0
    %58 = vmatpush1.msra.mxu0 0.0
    %59 = vmatprep.subr.mxu0 0.0
    %60 = vmatpush1.msra.mxu0 0.0
    %61 = vmatprep.subr.mxu0 0.0
    %62 = vmatpush1.msra.mxu0 0.0
    %63 = vmatprep.subr.mxu0 0.0
    %64 = vmatpush1.msra.mxu0 0.0
    %65 = vmatprep.subr.mxu0 0.0
    %66 = vmatpush1.msra.mxu0 0.0
    %67 = vmatprep.subr.mxu0 0.0
    %68 = vmatpush1.msra.mxu0 0.0
    %69 = vmatprep.subr.mxu0 0.0
    %70 = vmatpush1.msra.mxu0 0.0
    %71 = vmatprep.subr.mxu0 0.0
    %72 = vmatpush1.msra.mxu0 0.0
    %73 = vmatprep.subr.mxu0 0.0
    %74 = vmatpush1.msra.mxu0 0.0
    %75 = vmatprep.subr.mxu0 0.0
    %76 = vmatpush1.msra.mxu0 0.0
    %77 = vmatprep.subr.mxu0 0.0
    %78 = vmatpush1.msra.mxu0 0.0
    %79 = vmatprep.subr.mxu0 0.0
    %80 = vmatpush1.msra.mxu0 0.0
    %81 = vmatprep.subr.mxu0 0.0
    %82 = vmatpush1.msra.mxu0 0.0
    %83 = vmatprep.subr.mxu0 0.0
    %84 = vmatpush1.msra.mxu0 0.0
    %85 = vmatprep.subr.mxu0 0.0
    %86 = vmatpush1.msra.mxu0 0.0
    %87 = vmatprep.subr.mxu0 0.0
    %88 = vmatpush1.msra.mxu0 0.0
    %89 = vmatprep.subr.mxu0 0.0
    %90 = vmatpush1.msra.mxu0 0.0
    %91 = vmatprep.subr.mxu0 0.0
    %92 = vmatpush1.msra.mxu0 0.0
    %93 = vmatprep.subr.mxu0 0.0
    %94 = vmatpush1.msra.mxu0 0.0
    %95 = vmatprep.subr.mxu0 0.0
    %96 = vmatpush1.msra.mxu0 0.0
    %97 = vmatprep.subr.mxu0 0.0
    %98 = vmatpush1.msra.mxu0 0.0
    %99 = vmatprep.subr.mxu0 0.0
    %100 = vmatpush1.msra.mxu0 0.0
    %101 = vmatprep.subr.mxu0 0.0
    %102 = vmatpush1.msra.mxu0 0.0
    %103 = vmatprep.subr.mxu0 0.0
    %104 = vmatpush1.msra.mxu0 0.0
    %105 = vmatprep.mubr.f32.mxu0 0.0
    %106 = vmatmul.mubr.f32.gmra.mrb[0].mxu0 %v26
    %v107 = vpop.f32.mrb[0].mxu0
    %v108 = vadd.f32 0.0, %v107
    %v109 = vpop.f32.mrb[0].mxu0
    %110 = vmatprep.mubr.f32.mxu0 0.0
    %111 = vmatmul.mubr.f32.gmra.mrb[0].mxu0 %v29
    %v112 = vpop.f32.mrb[0].mxu0
    %v113 = vadd.f32 0.0, %v112
    %v114 = vpop.f32.mrb[0].mxu0
    %115 = vmatprep.mubr.f32.mxu0 0.0
    %116 = vmatmul.mubr.f32.gmra.mrb[0].mxu0 %v32
    %v117 = vpop.f32.mrb[0].mxu0
    %v118 = vadd.f32 0.0, %v117
    %v119 = vpop.f32.mrb[0].mxu0
    %120 = vmatprep.mubr.f32.mxu0 0.0
    %121 = vmatmul.mubr.f32.gmra.mrb[0].mxu0 %v35
    %v122 = vpop.f32.mrb[0].mxu0
    %v123 = vadd.f32 0.0, %v122
    %v124 = vpop.f32.mrb[0].mxu0
    %125 = vdwg.mxu0
    %v126 = vmax.f32 %v108, 0.0
    %v127 = vmax.f32 %v113, 0.0
    %v128 = vmax.f32 %v118, 0.0
    %v129 = vmax.f32 %v123, 0.0
    %v130 = vld [vmem:[%s2] sm:$0xff]
    %v131 = vld [vmem:[%s2 + $0x8] sm:$0xff]
    %v132 = vld [vmem:[%s2 + $0x10] sm:$0xff]
    %v133 = vld [vmem:[%s2 + $0x18] sm:$0xff]
    %v134 = vld [vmem:[%s2 + $0x20] sm:$0xff]
    %v135 = vld [vmem:[%s2 + $0x28] sm:$0xff]
    %v136 = vld [vmem:[%s2 + $0x30] sm:$0xff]
    %v137 = vld [vmem:[%s2 + $0x38] sm:$0xff]
    %v138 = vld [vmem:[%s2 + $0x40] sm:$0x3]
    %vm139 = vcmask 539648
    %v141 = vsel %vm139, %v126, 0
    %v144 = vsel %vm139, %v127, 0
    %v147 = vsel %vm139, %v128, 0
    %v150 = vsel %vm139, %v129, 0
    %v153 = vsel %vm37, %v138, 0
    %155 = vmatprep.subr.mxu0 0.0
    %156 = vmatpush1.msra.mxu0 %v130
    %157 = vmatprep.subr.mxu0 0.0
    %158 = vmatpush1.msra.mxu0 %v131
    %159 = vmatprep.subr.mxu0 0.0
    %160 = vmatpush1.msra.mxu0 %v132
    %161 = vmatprep.subr.mxu0 0.0
    %162 = vmatpush1.msra.mxu0 %v133
    %163 = vmatprep.subr.mxu0 0.0
    %164 = vmatpush1.msra.mxu0 %v134
    %165 = vmatprep.subr.mxu0 0.0
    %166 = vmatpush1.msra.mxu0 %v135
    %167 = vmatprep.subr.mxu0 0.0
    %168 = vmatpush1.msra.mxu0 %v136
    %169 = vmatprep.subr.mxu0 0.0
    %170 = vmatpush1.msra.mxu0 %v137
    %171 = vmatprep.subr.mxu0 0.0
    %172 = vmatpush1.msra.mxu0 %v153
    %173 = vmatprep.subr.mxu0 0.0
    %174 = vmatpush1.msra.mxu0 0.0
    %175 = vmatprep.subr.mxu0 0.0
    %176 = vmatpush1.msra.mxu0 0.0
    %177 = vmatprep.subr.mxu0 0.0
    %178 = vmatpush1.msra.mxu0 0.0
    %179 = vmatprep.subr.mxu0 0.0
    %180 = vmatpush1.msra.mxu0 0.0
    %181 = vmatprep.subr.mxu0 0.0
    %182 = vmatpush1.msra.mxu0 0.0
    %183 = vmatprep.subr.mxu0 0.0
    %184 = vmatpush1.msra.mxu0 0.0
    %185 = vmatprep.subr.mxu0 0.0
    %186 = vmatpush1.msra.mxu0 0.0
    %187 = vmatprep.subr.mxu0 0.0
    %188 = vmatpush1.msra.mxu0 0.0
    %189 = vmatprep.subr.mxu0 0.0
    %190 = vmatpush1.msra.mxu0 0.0
    %191 = vmatprep.subr.mxu0 0.0
    %192 = vmatpush1.msra.mxu0 0.0
    %193 = vmatprep.subr.mxu0 0.0
    %194 = vmatpush1.msra.mxu0 0.0
    %195 = vmatprep.subr.mxu0 0.0
    %196 = vmatpush1.msra.mxu0 0.0
    %197 = vmatprep.subr.mxu0 0.0
    %198 = vmatpush1.msra.mxu0 0.0
    %199 = vmatprep.subr.mxu0 0.0
    %200 = vmatpush1.msra.mxu0 0.0
    %201 = vmatprep.subr.mxu0 0.0
    %202 = vmatpush1.msra.mxu0 0.0
    %203 = vmatprep.subr.mxu0 0.0
    %204 = vmatpush1.msra.mxu0 0.0
    %205 = vmatprep.subr.mxu0 0.0
    %206 = vmatpush1.msra.mxu0 0.0
    %207 = vmatprep.subr.mxu0 0.0
    %208 = vmatpush1.msra.mxu0 0.0
    %209 = vmatprep.subr.mxu0 0.0
    %210 = vmatpush1.msra.mxu0 0.0
    %211 = vmatprep.subr.mxu0 0.0
    %212 = vmatpush1.msra.mxu0 0.0
    %213 = vmatprep.subr.mxu0 0.0
    %214 = vmatpush1.msra.mxu0 0.0
    %215 = vmatprep.subr.mxu0 0.0
    %216 = vmatpush1.msra.mxu0 0.0
    %217 = vmatprep.subr.mxu0 0.0
    %218 = vmatpush1.msra.mxu0 0.0
    %219 = vmatprep.mubr.f32.mxu0 0.0
    %220 = vmatmul.mubr.f32.gmra.mrb[0].mxu0 %v141
    %v221 = vpop.f32.mrb[0].mxu0
    %v222 = vadd.f32 0.0, %v221
    %v223 = vpop.f32.mrb[0].mxu0
    %224 = vmatprep.mubr.f32.mxu0 0.0
    %225 = vmatmul.mubr.f32.gmra.mrb[0].mxu0 %v144
    %v226 = vpop.f32.mrb[0].mxu0
    %v227 = vadd.f32 0.0, %v226
    %v228 = vpop.f32.mrb[0].mxu0
    %229 = vmatprep.mubr.f32.mxu0 0.0
    %230 = vmatmul.mubr.f32.gmra.mrb[0].mxu0 %v147
    %v231 = vpop.f32.mrb[0].mxu0
    %v232 = vadd.f32 0.0, %v231
    %v233 = vpop.f32.mrb[0].mxu0
    %234 = vmatprep.mubr.f32.mxu0 0.0
    %235 = vmatmul.mubr.f32.gmra.mrb[0].mxu0 %v150
    %v236 = vpop.f32.mrb[0].mxu0
    %v237 = vadd.f32 0.0, %v236
    %v238 = vpop.f32.mrb[0].mxu0
    %239 = vdwg.mxu0
    %vm240 = vcmask 130048
    %v242 = vsel %vm240, %v222, 0
    %v245 = vsel %vm240, %v227, 0
    %247 = vmatprep.subr.mxu0 0.0
    %248 = vmatpush1.xpose.msra.mxu0 %v245
    %249 = vmatprep.subr.mxu0 0.0
    %250 = vmatpush1.xpose.msra.mxu0 0.0
    %251 = vmatprep.subr.mxu0 0.0
    %252 = vmatpush1.xpose.msra.mxu0 0.0
    %253 = vmatprep.subr.mxu0 0.0
    %254 = vmatpush1.xpose.msra.mxu0 0.0
    %255 = vmatprep.subr.mxu0 0.0
    %256 = vmatpush1.xpose.msra.mxu0 0.0
    %257 = vmatprep.subr.mxu0 0.0
    %258 = vmatpush1.xpose.msra.mxu0 0.0
    %259 = vmatprep.subr.mxu0 0.0
    %260 = vmatpush1.xpose.msra.mxu0 0.0
    %261 = vmatprep.subr.mxu0 0.0
    %262 = vmatpush1.xpose.msra.mxu0 0.0
    %263 = vmatprep.subr.mxu0 0.0
    %264 = vmatpush1.xpose.msra.mxu0 0.0
    %265 = vmatprep.subr.mxu0 0.0
    %266 = vmatpush1.xpose.msra.mxu0 0.0
    %267 = vmatprep.subr.mxu0 0.0
    %268 = vmatpush1.xpose.msra.mxu0 0.0
    %269 = vmatprep.subr.mxu0 0.0
    %270 = vmatpush1.xpose.msra.mxu0 0.0
    %271 = vmatprep.subr.mxu0 0.0
    %272 = vmatpush1.xpose.msra.mxu0 0.0
    %273 = vmatprep.subr.mxu0 0.0
    %274 = vmatpush1.xpose.msra.mxu0 0.0
    %275 = vmatprep.subr.mxu0 0.0
    %276 = vmatpush1.xpose.msra.mxu0 0.0
    %277 = vmatprep.subr.mxu0 0.0
    %278 = vmatpush1.xpose.msra.mxu0 0.0
    %279 = vmatprep.subr.mxu0 0.0
    %280 = vmatpush1.xpose.msra.mxu0 0.0
    %281 = vmatprep.subr.mxu0 0.0
    %282 = vmatpush1.xpose.msra.mxu0 0.0
    %283 = vmatprep.subr.mxu0 0.0
    %284 = vmatpush1.xpose.msra.mxu0 0.0
    %285 = vmatprep.subr.mxu0 0.0
    %286 = vmatpush1.xpose.msra.mxu0 0.0
    %287 = vmatprep.subr.mxu0 0.0
    %288 = vmatpush1.xpose.msra.mxu0 0.0
    %289 = vmatprep.subr.mxu0 0.0
    %290 = vmatpush1.xpose.msra.mxu0 0.0
    %291 = vmatprep.subr.mxu0 0.0
    %292 = vmatpush1.xpose.msra.mxu0 0.0
    %293 = vmatprep.subr.mxu0 0.0
    %294 = vmatpush1.xpose.msra.mxu0 0.0
    %295 = vmatprep.subr.mxu0 0.0
    %296 = vmatpush1.xpose.msra.mxu0 0.0
    %297 = vmatprep.subr.mxu0 0.0
    %298 = vmatpush1.xpose.msra.mxu0 0.0
    %299 = vmatprep.subr.mxu0 0.0
    %300 = vmatpush1.xpose.msra.mxu0 0.0
    %301 = vmatprep.subr.mxu0 0.0
    %302 = vmatpush1.xpose.msra.mxu0 0.0
    %303 = vmatprep.subr.mxu0 0.0
    %304 = vmatpush1.xpose.msra.mxu0 0.0
    %305 = vmatprep.subr.mxu0 0.0
    %306 = vmatpush1.xpose.msra.mxu0 0.0
    %307 = vmatprep.subr.mxu0 0.0
    %308 = vmatpush1.xpose.msra.mxu0 0.0
    %309 = vmatprep.subr.mxu0 0.0
    %310 = vmatpush1.xpose.msra.mxu0 0.0
    %311 = vmatprep.mubr.f32.mxu0 0.0
    %312 = vmatmul.mubr.f32.gmra.mrb[0].mxu0 %v242
    %v313 = vpop.f32.mrb[0].mxu0
    %v314 = vadd.f32 0.0, %v313
    %v315 = vpop.f32.mrb[0].mxu0
    %316 = vdwg.mxu0
    %v318 = vsel %vm240, %v232, 0
    %v321 = vsel %vm240, %v237, 0
    %323 = vmatprep.subr.mxu0 0.0
    %324 = vmatpush1.xpose.msra.mxu0 %v321
    %325 = vmatprep.subr.mxu0 0.0
    %326 = vmatpush1.xpose.msra.mxu0 0.0
    %327 = vmatprep.subr.mxu0 0.0
    %328 = vmatpush1.xpose.msra.mxu0 0.0
    %329 = vmatprep.subr.mxu0 0.0
    %330 = vmatpush1.xpose.msra.mxu0 0.0
    %331 = vmatprep.subr.mxu0 0.0
    %332 = vmatpush1.xpose.msra.mxu0 0.0
    %333 = vmatprep.subr.mxu0 0.0
    %334 = vmatpush1.xpose.msra.mxu0 0.0
    %335 = vmatprep.subr.mxu0 0.0
    %336 = vmatpush1.xpose.msra.mxu0 0.0
    %337 = vmatprep.subr.mxu0 0.0
    %338 = vmatpush1.xpose.msra.mxu0 0.0
    %339 = vmatprep.subr.mxu0 0.0
    %340 = vmatpush1.xpose.msra.mxu0 0.0
    %341 = vmatprep.subr.mxu0 0.0
    %342 = vmatpush1.xpose.msra.mxu0 0.0
    %343 = vmatprep.subr.mxu0 0.0
    %344 = vmatpush1.xpose.msra.mxu0 0.0
    %345 = vmatprep.subr.mxu0 0.0
    %346 = vmatpush1.xpose.msra.mxu0 0.0
    %347 = vmatprep.subr.mxu0 0.0
    %348 = vmatpush1.xpose.msra.mxu0 0.0
    %349 = vmatprep.subr.mxu0 0.0
    %350 = vmatpush1.xpose.msra.mxu0 0.0
    %351 = vmatprep.subr.mxu0 0.0
    %352 = vmatpush1.xpose.msra.mxu0 0.0
    %353 = vmatprep.subr.mxu0 0.0
    %354 = vmatpush1.xpose.msra.mxu0 0.0
    %355 = vmatprep.subr.mxu0 0.0
    %356 = vmatpush1.xpose.msra.mxu0 0.0
    %357 = vmatprep.subr.mxu0 0.0
    %358 = vmatpush1.xpose.msra.mxu0 0.0
    %359 = vmatprep.subr.mxu0 0.0
    %360 = vmatpush1.xpose.msra.mxu0 0.0
    %361 = vmatprep.subr.mxu0 0.0
    %362 = vmatpush1.xpose.msra.mxu0 0.0
    %363 = vmatprep.subr.mxu0 0.0
    %364 = vmatpush1.xpose.msra.mxu0 0.0
    %365 = vmatprep.subr.mxu0 0.0
    %366 = vmatpush1.xpose.msra.mxu0 0.0
    %367 = vmatprep.subr.mxu0 0.0
    %368 = vmatpush1.xpose.msra.mxu0 0.0
    %369 = vmatprep.subr.mxu0 0.0
    %370 = vmatpush1.xpose.msra.mxu0 0.0
    %371 = vmatprep.subr.mxu0 0.0
    %372 = vmatpush1.xpose.msra.mxu0 0.0
    %373 = vmatprep.subr.mxu0 0.0
    %374 = vmatpush1.xpose.msra.mxu0 0.0
    %375 = vmatprep.subr.mxu0 0.0
    %376 = vmatpush1.xpose.msra.mxu0 0.0
    %377 = vmatprep.subr.mxu0 0.0
    %378 = vmatpush1.xpose.msra.mxu0 0.0
    %379 = vmatprep.subr.mxu0 0.0
    %380 = vmatpush1.xpose.msra.mxu0 0.0
    %381 = vmatprep.subr.mxu0 0.0
    %382 = vmatpush1.xpose.msra.mxu0 0.0
    %383 = vmatprep.subr.mxu0 0.0
    %384 = vmatpush1.xpose.msra.mxu0 0.0
    %385 = vmatprep.subr.mxu0 0.0
    %386 = vmatpush1.xpose.msra.mxu0 0.0
    %387 = vmatprep.mubr.f32.mxu0 0.0
    %388 = vmatmul.mubr.f32.gmra.mrb[0].mxu0 %v318
    %v389 = vpop.f32.mrb[0].mxu0
    %v390 = vadd.f32 0.0, %v389
    %v391 = vpop.f32.mrb[0].mxu0
    %392 = vdwg.mxu0
    %vm393 = vcmask 64512
    %v394 = vsel %vm393, %v314, -inf
    %395 = vmax.xlane.f32.xlu0 %v394
    %v396 = vpop.xlane.xlu0 %395
    %v397 = vsel %vm393, %v390, -inf
    %398 = vmax.xlane.f32.xlu0 %v397
    %v399 = vpop.xlane.xlu0 %398
    %v400 = vsub.f32 %v314, %v396
    %v401 = vsub.f32 %v390, %v399
    %v402 = vmul.f32 %v400, 1.442695
    %v403 = vpow.pop %v402
    %v404 = vmul.f32 %v401, 1.442695
    %v405 = vpow.pop %v404
    %v406 = vsel %vm393, %v403, 0.0
    %407 = vadd.xlane.f32.xlu0 %v406
    %v408 = vpop.xlane.xlu0 %407
    %v409 = vsel %vm393, %v405, 0.0
    %410 = vadd.xlane.f32.xlu0 %v409
    %v411 = vpop.xlane.xlu0 %410
    %v412 = vrcp.pop %v408
    %v413 = vrcp.pop %v411
    %v414 = vmul.f32 %v403, %v412
    %v415 = vmul.f32 %v405, %v413
    %416 = vst.msk [vmem:[#allocation2] sm:$0xff] %vm393, %v414
    %417 = vst.msk [vmem:[#allocation2 + $0x8] sm:$0xff] %vm393, %v415
    // Predicated region
    $region14: #{tpu_custom_call.1} parent=1 // pred_check
      _
    $region15: #{tpu_custom_call.1} parent=1 // pred_check_branch
      %419 = sbr.rel (0) target = $region17
    $region16: #{tpu_custom_call.1} parent=1 // pred_region
      %s421 = ssub.s32 256, 256
      %422 = vsyncadd [#allocation3], %s421
      %s423 = sshll.u32 [#allocation2], 4
      %s424 = int_to_ptr.vmem [resolvable:$true] %s423
      %429 = dma.vmem_to_hbm [thread:$0]  %s424, 256, %s3, [#allocation3], 128, 128, 8
    $region17: #{tpu_custom_call.1} parent=1 // pred_fallthru
      _
    // Predicated region
    $region18: #{tpu_custom_call.1} parent=1 // pred_check
      _
    $region19: #{tpu_custom_call.1} parent=1 // pred_check_branch
      %431 = sbr.rel (0) target = $region21
    $region20: #{tpu_custom_call.1} parent=1 // pred_region
      %432 = dma.done [#allocation3], 256
    $region21: #{tpu_custom_call.1} parent=1 // pred_fallthru
      _
    %433 = vsyncpa [#allocation3], 1

</llo_original>
